<compile_context>
chip_gen: v6e
topology: v6e:2x2x1
jax: 0.10.0
libtpu: 0.0.40
codegen_flags: <defaults>
</compile_context>

<pallas_src>
import jax
import jax.numpy as jnp
from jax.experimental import pallas as pl
from jax.experimental.pallas import tpu as pltpu

_LANE = 128
_SUBLANE = 8
_MAX_TM = 2048  # row-tile cap; the mem-bound roofline plateaus well before this


def _round_up(v, m):
    return (v + m - 1) // m * m


def _prod(xs):
    p = 1
    for d in xs:
        p *= int(d)
    return p


def _pad_cols(c_out):
    """Lane-pad the output width only when it is already >= one lane (128);
    narrow outputs keep their exact width (masked stores beat 4-8x padded HBM
    traffic + the extra slice)."""
    return _round_up(c_out, _LANE) if c_out >= _LANE else c_out


def _vmem_budget_and_limit():
    """(working-set budget, scoped-VMEM limit) derived from the chip.

    v5e/v6e have 128 MiB physical VMEM but only 16/32 MiB scoped defaults;
    v7x has 64 MiB physical.  Request an explicit limit well under physical
    and keep ~8 MiB headroom for Mosaic internal scratch.
    """
    try:
        phys = int(pltpu.get_tpu_info().vmem_capacity_bytes)
    except Exception:
        phys = 64 << 20  # v7x: smallest physical VMEM per TensorCore
    limit = min(3 * phys // 4, 96 << 20)
    budget = max(limit - (8 << 20), 8 << 20)
    return budget, limit


def _pick_tile(m, per_row_bytes, resident_bytes, budget_bytes):
    """Pick (tm, m_pad) for a 1-D row-tile grid.

    * tm is a multiple of 8 (sublane constraint) and is capped by the VMEM
      budget: row tiles are double-buffered, resident weights are charged at
      their default two pipeline buffers.
    * The grid length (m_pad // tm) is even whenever m allows it so v7x's two
      TensorCores (dimension_semantics="parallel") stay balanced.
    * Row padding (m_pad - m) is kept below one tile in the common cases.
    """
    m8 = _round_up(max(int(m), 1), _SUBLANE)
    avail = max(budget_bytes - resident_bytes, 2 * _SUBLANE * per_row_bytes)
    cap = min(_MAX_TM, avail // (2 * per_row_bytes))
    cap = max(_SUBLANE, cap // _SUBLANE * _SUBLANE)

    if m8 <= _SUBLANE:
        return _SUBLANE, _SUBLANE  # a single 8-row tile; nothing to split

    g = max(2, pl.cdiv(m8, cap))
    g += g % 2  # even number of tiles
    # Bounded search for an even grid whose last tile is not pure padding.
    for cand in range(g, g + 17, 2):
        tm = _round_up(pl.cdiv(m8, cand), _SUBLANE)
        if tm <= cap and (cand - 1) * tm < m8:
            return tm, cand * tm
    # Fallback (very long grids / degenerate budgets): largest fitting tile,
    # grid forced to an even length.
    tm = cap
    g = pl.cdiv(m8, tm)
    g += g % 2
    return tm, g * tm


# ----------------------------- weight packing ------------------------------ #

def pack_adapter_weights(down_weights, up_weight, dtype=None):
    """Pre-pack the MultiLevelAdapter weights once (e.g. at model load).

    down_weights: list of (c_down, c_in) nn.Linear weights (PyTorch layout).
    up_weight   : (c_out, c_cat) nn.Linear weight, c_cat == len(down)*c_down.
    Returns (wd, wu):
      wd: (len(down)*c_in, c_down)  -- row-stacked transposed down weights
      wu: (c_cat, c_out_pad)        -- transposed, lane-padded up weight
    Passing dtype=jnp.bfloat16 halves the weight/activation HBM traffic
    (accumulation in the kernel stays f32).
    """
    dtype = dtype or up_weight.dtype
    wd = jnp.concatenate([w.T for w in down_weights], axis=0).astype(dtype)
    c_out = up_weight.shape[0]
    c_out_pad = _pad_cols(c_out)
    wu = up_weight.T.astype(dtype)
    if c_out_pad != c_out:
        wu = jnp.pad(wu, ((0, 0), (0, c_out_pad - c_out)))
    return wd, wu


def pack_linear_weight(weight, dtype=None):
    """Transpose + lane-pad a (c_out, c_in) nn.Linear weight once."""
    dtype = dtype or weight.dtype
    c_out = weight.shape[0]
    c_out_pad = _pad_cols(c_out)
    wt = weight.T.astype(dtype)
    if c_out_pad != c_out:
        wt = jnp.pad(wt, ((0, 0), (0, c_out_pad - c_out)))
    return wt


# --------------------------- fused adapter kernel --------------------------- #

def _make_adapter_kernel(n_taps, c_in, c_down, compute_dtype):
    """o = relu( sum_i relu(h_i @ Wd_i) @ Wu_i ) + x, accumulated in f32."""

    def kernel(*refs):
        h_refs = refs[:n_taps]
        x_ref, wd_ref, wu_ref, o_ref = refs[n_taps:]
        acc = None
        for i in range(n_taps):
            # DownSampler_i: (tm, c_in) @ (c_in, c_down) -> latent (stays in VMEM/vregs).
            lat = jnp.dot(h_refs[i][...],
                          wd_ref[pl.ds(i * c_in, c_in), :],
                          preferred_element_type=jnp.float32)
            lat = jnp.maximum(lat, 0.0).astype(compute_dtype)
            # Partial UpSampler contribution of this latent slice.
            part = jnp.dot(lat,
                           wu_ref[pl.ds(i * c_down, c_down), :],
                           preferred_element_type=jnp.float32)
            acc = part if acc is None else acc + part
        # relu of the full up-projection, then the fused residual add.
        y = jnp.maximum(acc, 0.0) + x_ref[...].astype(jnp.float32)
        o_ref[...] = y.astype(o_ref.dtype)

    return kernel


def multi_level_adapter_forward(x, hidden, down_weights=None, up_weight=None,
                                adapt_layers=(3, 6, 9, 12), *,
                                packed_weights=None, compute_dtype=None):
    """MultiLevelAdapter.forward: x + UpSampler(concat_i DownSampler_i(hidden[l_i-1])).

    Fully fused: one pallas_call, the concatenated latent never leaves VMEM.
    `packed_weights` (from pack_adapter_weights) skips the per-call transpose.
    """
    if packed_weights is None:
        packed_weights = pack_adapter_weights(down_weights, up_weight,
                                              dtype=compute_dtype)
    wd, wu = packed_weights
    n_taps = len(adapt_layers)
    c_down = wd.shape[1]
    c_in = wd.shape[0] // n_taps
    c_cat, c_out_pad = wu.shape
    c_out = x.shape[-1]
    assert c_cat == n_taps * c_down, "up weight / down weights are inconsistent"

    leading = x.shape[:-1]
    m = _prod(leading)
    cdtype = wd.dtype

    hs = [hidden[layer - 1].reshape(m, c_in).astype(cdtype)
          for layer in adapt_layers]
    x2d = x.reshape(m, c_out)  # residual keeps its original dtype (cast in-kernel)

    it_c = jnp.dtype(cdtype).itemsize
    it_x = jnp.dtype(x.dtype).itemsize
    # Double-buffered row tiles: 4 hiddens + residual + output ...
    per_row = n_taps * c_in * it_c + 2 * c_out_pad * it_x
    # ... plus the VMEM-resident weights at their default 2 pipeline buffers.
    resident = 2 * it_c * (wd.size + wu.size)
    budget, vmem_limit = _vmem_budget_and_limit()
    tm, m_pad = _pick_tile(m, per_row, resident, budget)

    if m_pad != m:
        hs = [jnp.pad(h, ((0, m_pad - m), (0, 0))) for h in hs]
        x2d = jnp.pad(x2d, ((0, m_pad - m), (0, 0)))
    if c_out_pad != c_out:
        x2d = jnp.pad(x2d, ((0, 0), (0, c_out_pad - c_out)))

    row_spec = pl.BlockSpec((tm, c_in), lambda i: (i, 0))
    # TODO(synk): once pipeline_mode=pl.Buffered(1) is validated on the target
    # jax build, pin the two resident weight specs to a single buffer and drop
    # the 2x charge in `resident` above.
    in_specs = [row_spec] * n_taps + [
        pl.BlockSpec((tm, c_out_pad), lambda i: (i, 0)),           # residual tile
        pl.BlockSpec((n_taps * c_in, c_down), lambda i: (0, 0)),   # resident down weights
        pl.BlockSpec((c_cat, c_out_pad), lambda i: (0, 0)),        # resident up weight
    ]

    out = pl.pallas_call(
        _make_adapter_kernel(n_taps, c_in, c_down, cdtype),
        out_shape=jax.ShapeDtypeStruct((m_pad, c_out_pad), x.dtype),
        grid_spec=pltpu.PrefetchScalarGridSpec(
            num_scalar_prefetch=0,
            grid=(m_pad // tm,),
            in_specs=in_specs,
            out_specs=pl.BlockSpec((tm, c_out_pad), lambda i: (i, 0)),
        ),
        compiler_params=pltpu.CompilerParams(
            dimension_semantics=("parallel",),  # row tiles split across v7x's 2 TCs
            vmem_limit_bytes=vmem_limit,
        ),
        cost_estimate=pl.CostEstimate(
            flops=2 * m_pad * (n_taps * c_in * c_down + c_cat * c_out_pad),
            transcendentals=0,
            bytes_accessed=m_pad * per_row + it_c * (wd.size + wu.size),
        ),
    )(*hs, x2d, wd, wu)

    if m_pad != m or c_out_pad != c_out:
        out = out[:m, :c_out]
    return out.reshape(leading + (c_out,))


# --------------------- standalone Linear(bias=False)+ReLU ------------------- #

def _make_linear_relu_kernel(with_residual):
    if with_residual:
        def kernel(x_ref, wt_ref, res_ref, o_ref):
            y = jnp.dot(x_ref[...], wt_ref[...], preferred_element_type=jnp.float32)
            o_ref[...] = (jnp.maximum(y, 0.0)
                          + res_ref[...].astype(jnp.float32)).astype(o_ref.dtype)
    else:
        def kernel(x_ref, wt_ref, o_ref):
            y = jnp.dot(x_ref[...], wt_ref[...], preferred_element_type=jnp.float32)
            o_ref[...] = jnp.maximum(y, 0.0).astype(o_ref.dtype)
    return kernel


def linear_relu_forward(x, weight=None, residual=None, *, packed_weight=None,
                        compute_dtype=None, c_out=None):
    """relu(x @ weight.T) [+ residual]; weight in PyTorch nn.Linear layout."""
    if packed_weight is None:
        assert weight is not None, "pass `weight` or `packed_weight`"
        packed_weight = pack_linear_weight(weight, dtype=compute_dtype)
    wt = packed_weight
    c_in, c_out_pad = wt.shape
    if c_out is None:
        c_out = int(weight.shape[0]) if weight is not None else c_out_pad
    cdtype = wt.dtype

    leading = x.shape[:-1]
    m = _prod(leading)
    x2d = x.reshape(m, c_in).astype(cdtype)
    out_dtype = x.dtype if residual is None else residual.dtype

    it_c = jnp.dtype(cdtype).itemsize
    per_row = c_in * it_c + c_out_pad * jnp.dtype(out_dtype).itemsize
    if residual is not None:
        per_row += c_out_pad * jnp.dtype(residual.dtype).itemsize
    budget, vmem_limit = _vmem_budget_and_limit()
    tm, m_pad = _pick_tile(m, per_row, 2 * it_c * wt.size, budget)

    if m_pad != m:
        x2d = jnp.pad(x2d, ((0, m_pad - m), (0, 0)))
    operands = [x2d, wt]
    in_specs = [pl.BlockSpec((tm, c_in), lambda i: (i, 0)),
                pl.BlockSpec((c_in, c_out_pad), lambda i: (0, 0))]  # resident weight
    if residual is not None:
        res2d = residual.reshape(m, c_out)  # keep original dtype; cast in-kernel
        if m_pad != m or c_out_pad != c_out:
            res2d = jnp.pad(res2d, ((0, m_pad - m), (0, c_out_pad - c_out)))
        operands.append(res2d)
        in_specs.append(pl.BlockSpec((tm, c_out_pad), lambda i: (i, 0)))

    out = pl.pallas_call(
        _make_linear_relu_kernel(residual is not None),
        out_shape=jax.ShapeDtypeStruct((m_pad, c_out_pad), out_dtype),
        grid_spec=pltpu.PrefetchScalarGridSpec(
            num_scalar_prefetch=0,
            grid=(m_pad // tm,),
            in_specs=in_specs,
            out_specs=pl.BlockSpec((tm, c_out_pad), lambda i: (i, 0)),
        ),
        compiler_params=pltpu.CompilerParams(
            dimension_semantics=("parallel",),
            vmem_limit_bytes=vmem_limit,
        ),
        cost_estimate=pl.CostEstimate(
            flops=2 * m_pad * c_in * c_out_pad,
            transcendentals=0,
            bytes_accessed=m_pad * per_row + it_c * wt.size,
        ),
    )(*operands)

    if m_pad != m or c_out_pad != c_out:
        out = out[:m, :c_out]
    return out.reshape(leading + (c_out,))


def downsampler_forward(x, weight, **kw):
    """DownSampler.forward: relu(Linear(c_in, c_in // reduction, bias=False)(x))."""
    return linear_relu_forward(x, weight, **kw)


def upsampler_forward(x, weight, residual=None, **kw):
    """UpSampler.forward (optionally fused with the adapter's residual add)."""
    return linear_relu_forward(x, weight, residual=residual, **kw)


# ----------------------------------- demo ----------------------------------- #

if __name__ == "__main__":
    key = jax.random.PRNGKey(0)
    keys = jax.random.split(key, 32)

    batch, seq, c_in, reduction = 2, 8, 32, 2
    adapt_layers = (3, 6, 9, 12)
    c_down = c_in // reduction                 # DownSampler output width
    c_cat = c_down * len(adapt_layers)         # UpSampler input width (== 2*c_in)

    # 12 transformer hidden states (the adapter taps layers 3, 6, 9, 12).
    hidden = [jax.random.normal(keys[i], (batch, seq, c_in), dtype=jnp.float32)
              for i in range(12)]
    x = jax.random.normal(keys[12], (batch, seq, c_in), dtype=jnp.float32)
    down_w = [jax.random.normal(keys[13 + i], (c_down, c_in), dtype=jnp.float32)
              * (c_in ** -0.5) for i in range(4)]
    up_w = jax.random.normal(keys[17], (c_in, c_cat), dtype=jnp.float32) \
        * (c_cat ** -0.5)

    # Pure-JAX references.
    def reference_linear_relu(x_, w_, residual=None):
        y = jnp.maximum(jnp.einsum("...i,oi->...o", x_, w_), 0.0)
        return y if residual is None else residual + y

    def reference_adapter(x_, hidden_, dws, uw, layers):
        lat = jnp.concatenate([reference_linear_relu(hidden_[l - 1], w)
                               for l, w in zip(layers, dws)], axis=-1)
        return x_ + reference_linear_relu(lat, uw)

    # 1) Standalone DownSampler kernel (narrow output, no lane padding to HBM).
    y_down = jax.block_until_ready(downsampler_forward(hidden[2], down_w[0]))
    y_down_ref = reference_linear_relu(hidden[2], down_w[0])
    assert y_down.shape == (batch, seq, c_down), y_down.shape
    assert jnp.allclose(y_down, y_down_ref, atol=1e-5, rtol=1e-5), \
        "DownSampler mismatch vs reference"

    # 2) Fully fused MultiLevelAdapter (BLIP_Retrieval.vision_adapter), f32 traffic.
    y = jax.block_until_ready(
        multi_level_adapter_forward(x, hidden, down_w, up_w, adapt_layers))
    y_ref = reference_adapter(x, hidden, down_w, up_w, adapt_layers)
    assert y.shape == (batch, seq, c_in), y.shape
    assert jnp.allclose(y, y_ref, atol=1e-4, rtol=1e-4), \
        "MultiLevelAdapter mismatch vs reference"

    # 3) Same fused adapter with bf16 HBM traffic: weights prepacked once at
    #    "model load", f32 accumulation and f32 residual added in-kernel.
    packed_bf16 = pack_adapter_weights(down_w, up_w, dtype=jnp.bfloat16)
    y_bf16 = jax.block_until_ready(
        multi_level_adapter_forward(x, hidden, adapt_layers=adapt_layers,
                                    packed_weights=packed_bf16))
    assert y_bf16.shape == (batch, seq, c_in), y_bf16.shape
    assert jnp.allclose(y_bf16, y_ref, atol=0.1, rtol=0.1), \
        "bf16 adapter deviates too far from the f32 reference"

    print("KERNEL_OK")
</pallas_src>

<mosaic_0001>
module attributes {stable_mosaic.version = 11 : i64} {
  func.func @kernel(%arg0: i32, %arg1: memref<8x32xf32, #tpu.memory_space<vmem>>, %arg2: memref<32x16xf32, #tpu.memory_space<vmem>>, %arg3: memref<8x16xf32, #tpu.memory_space<vmem>>) attributes {dimension_semantics = [#tpu.dimension_semantics<parallel>], iteration_bounds = array<i64: 2>, scalar_prefetch = 0 : i64, scratch_operands = 0 : i64, tpu.core_type = #tpu.core_type<tc>, window_params = [{transform_indices = @transform_0, window_bounds = array<i64: 8, 32>}, {pipeline_mode = #tpu.pipeline_mode<synchronous>, transform_indices = @transform_1, window_bounds = array<i64: 32, 16>}, {transform_indices = @transform_2, window_bounds = array<i64: 8, 16>}]} {
    %c0 = arith.constant 0 : index
    %c0_0 = arith.constant 0 : index
    %0 = vector.load %arg1[%c0, %c0_0] : memref<8x32xf32, #tpu.memory_space<vmem>>, vector<8x32xf32>
    %c0_1 = arith.constant 0 : index
    %c0_2 = arith.constant 0 : index
    %1 = vector.load %arg2[%c0_1, %c0_2] : memref<32x16xf32, #tpu.memory_space<vmem>>, vector<32x16xf32>
    %cst = arith.constant dense<0.000000e+00> : vector<8x16xf32>
    %2 = tpu.matmul %0, %1, %cst {dimension_numbers = #tpu.dot_dimension_numbers<[1], [0], [0], [1], [0, 0, 1, 1], [], []>} : vector<8x32xf32>, vector<32x16xf32>, vector<8x16xf32> -> vector<8x16xf32>
    %cst_3 = arith.constant 0.000000e+00 : f32
    %3 = vector.broadcast %cst_3 : f32 to vector<8x16xf32>
    %4 = arith.maximumf %2, %3 : vector<8x16xf32>
    %c0_4 = arith.constant 0 : index
    %c0_5 = arith.constant 0 : index
    %5 = vector.load %arg3[%c0_4, %c0_5] : memref<8x16xf32, #tpu.memory_space<vmem>>, vector<8x16xf32>
    tpu.vector_store %arg3[%c0_4, %c0_5], %4 {strides = array<i32>} : memref<8x16xf32, #tpu.memory_space<vmem>>, vector<8x16xf32>,
    return
  }
  func.func @transform_0(%arg0: i32) -> (i32, i32) {
    %c0_i32 = arith.constant 0 : i32
    %c0_i32_0 = arith.constant 0 : i32
    return %arg0, %c0_i32 : i32, i32
  }
  func.func @transform_1(%arg0: i32) -> (i32, i32) {
    %c0_i32 = arith.constant 0 : i32
    %c0_i32_0 = arith.constant 0 : i32
    %c0_i32_1 = arith.constant 0 : i32
    return %c0_i32, %c0_i32_0 : i32, i32
  }
  func.func @transform_2(%arg0: i32) -> (i32, i32) {
    %c0_i32 = arith.constant 0 : i32
    %c0_i32_0 = arith.constant 0 : i32
    return %arg0, %c0_i32 : i32, i32
  }
}

</mosaic_0001>

<llo_original>
// kernel: tpu_custom_call.1
$region0: #{tpu_custom_call.1}
  #allocation0 [shape = 'u32[]', space=smem, size = 0x4, offset = 0x4, fixed_abs, tag = 'smem constant byte address 0x4 - core index']
  #allocation1 [shape = 'u32[144,128]{1,0:T(1,128)}', space=vmem, size = 0x12000, scoped, tag = 'internal scratch']
  %s0 = inlined_call_operand.vmem [shape: f32[16,32], index: 0, kind: input, shape index: {}]
  %s1 = inlined_call_operand.vmem [shape: f32[32,16], index: 1, kind: input, shape index: {}]
  %s2 = inlined_call_operand.hbm [shape: f32[16,16], index: 2, kind: output, shape index: {}]
  %s3 = sld [smem:[#allocation0]]
  $region41: #{tpu_custom_call.1} parent=0
    _
  %s5 = ssub.s32 1, %s3
  %s6 = scalar_select 0, %s5, %s3
  $region1: #{tpu_custom_call.1} parent=0
    #allocation2 [shape = 'u8[8192]{0}', space=vmem, size = 0x2000, scoped, tag = 'output window, operand 0']
    #allocation3 [shape = 's32[2]{0}', space=sflag, size = 0x8, scoped, tag = 'scoped memory for tpu_custom_call.1']
    %7 = vsyncpa [#allocation3], 0
    %s8 = scalar_lea.sflag [#allocation3], 1
    %9 = vsyncpa %s8, 0
    loop: start=0, step=1, limit=4
    $region2: #{tpu_custom_call.1} parent=1 // loop_pre_header
      _
    $region3: #{tpu_custom_call.1} parent=1 // loop_header
      %s11 = sphi 0, %s15
      %p12 = scmp.ge.s32.totalorder %s11, 4
      %s21 = sphi 0, %s23
      %s24 = sphi 0, %s21
      %s25 = sphi 0, %s24
      %s41 = sphi 0, %s25
      %s45 = sphi 0, %s45
      %s47 = sphi 0, %s45
      %s48 = sphi 0, %s47
      %s62 = sphi 0, %s48
      %s68 = sphi 0, %s70
      %s71 = sphi 0, %s68
      %s72 = sphi 0, %s71
      %s88 = sphi 0, %s72
    $region4: #{tpu_custom_call.1} parent=1 // loop_header_branch
      %14 = sbr.rel (%p12) target = $region8
    $region5: #{tpu_custom_call.1} parent=1 // loop_body
      %s16 = ssub.s32 %s11, 1
      %s17 = ssub.s32 %s11, 2
      %s18 = sadd.s32 %s11, 1
      %s19 = ssub.s32 %s11, %s18
      %p20 = scmp.eq.s32.totalorder %s19, 0
      %s22 = sadd.s32 %s21, 1
      %s23 = scalar_select %p20, %s21, %s22
      %p26 = pneg %p20
      %p27 = scmp.eq.s32.totalorder %s11, 1
      %p28 = por %p26, %p27
      %p29 = scmp.ne.s32.totalorder %s21, %s24
      %p30 = scmp.eq.s32.totalorder %s11, 0
      %p31 = por %p29, %p30
      %p32 = scmp.ne.s32.totalorder %s21, %s24
      %p33 = scmp.eq.s32.totalorder %s16, 1
      %p34 = por %p32, %p33
      %p35 = scmp.ne.s32.totalorder %s24, %s25
      %p36 = scmp.eq.s32.totalorder %s16, 0
      %p37 = por %p35, %p36
      %p38 = scmp.ne.s32.totalorder %s24, %s25
      %p39 = scmp.eq.s32.totalorder %s17, 1
      %p40 = por %p38, %p39
      %p42 = scmp.ne.s32.totalorder %s25, %s41
      %p43 = scmp.eq.s32.totalorder %s17, 0
      %p44 = por %p42, %p43
      %s46 = sadd.s32 %s45, 1
      %p49 = scmp.eq.s32.totalorder %s11, 1
      %p50 = scmp.ne.s32.totalorder %s45, %s47
      %p51 = scmp.eq.s32.totalorder %s11, 0
      %p52 = por %p50, %p51
      %p53 = scmp.ne.s32.totalorder %s45, %s47
      %p54 = scmp.eq.s32.totalorder %s16, 1
      %p55 = por %p53, %p54
      %p56 = scmp.ne.s32.totalorder %s47, %s48
      %p57 = scmp.eq.s32.totalorder %s16, 0
      %p58 = por %p56, %p57
      %p59 = scmp.ne.s32.totalorder %s47, %s48
      %p60 = scmp.eq.s32.totalorder %s17, 1
      %p61 = por %p59, %p60
      %p63 = scmp.ne.s32.totalorder %s48, %s62
      %p64 = scmp.eq.s32.totalorder %s17, 0
      %p65 = por %p63, %p64
      %s66 = ssub.s32 %s11, %s18
      %p67 = scmp.eq.s32.totalorder %s66, 0
      %s69 = sadd.s32 %s68, 1
      %s70 = scalar_select %p67, %s68, %s69
      %p73 = pneg %p67
      %p74 = scmp.eq.s32.totalorder %s11, 1
      %p75 = por %p73, %p74
      %p76 = scmp.ne.s32.totalorder %s68, %s71
      %p77 = scmp.eq.s32.totalorder %s11, 0
      %p78 = por %p76, %p77
      %p79 = scmp.ne.s32.totalorder %s68, %s71
      %p80 = scmp.eq.s32.totalorder %s16, 1
      %p81 = por %p79, %p80
      %p82 = scmp.ne.s32.totalorder %s71, %s72
      %p83 = scmp.eq.s32.totalorder %s16, 0
      %p84 = por %p82, %p83
      %p85 = scmp.ne.s32.totalorder %s71, %s72
      %p86 = scmp.eq.s32.totalorder %s17, 1
      %p87 = por %p85, %p86
      %p89 = scmp.ne.s32.totalorder %s72, %s88
      %p90 = scmp.eq.s32.totalorder %s17, 0
      %p91 = por %p89, %p90
      %p92 = scmp.le.s32.totalorder 1, %s11
      %p93 = scmp.lt.s32.totalorder %s11, 3
      %p94 = pnand %p92, %p93
      %p95 = pneg %p94
      // Predicated region
      $region9: #{tpu_custom_call.1} parent=5 // pred_check
        _
      $region10: #{tpu_custom_call.1} parent=5 // pred_check_branch
        %97 = sbr.rel (%p94) target = $region12
      $region11: #{tpu_custom_call.1} parent=5 // pred_region
        %s98 = ssub.s32 %s11, 1
        // Predicated region
        $region13: #{tpu_custom_call.1} parent=11 // pred_check
          %p99 = pneg %p58
        $region14: #{tpu_custom_call.1} parent=11 // pred_check_branch
          %101 = sbr.rel (%p99) target = $region16
        $region15: #{tpu_custom_call.1} parent=11 // pred_region
          _
        $region16: #{tpu_custom_call.1} parent=11 // pred_fallthru
          _
      $region12: #{tpu_custom_call.1} parent=5 // pred_fallthru
        _
      %p102 = scmp.lt.s32.totalorder %s11, 2
      // Predicated region
      $region17: #{tpu_custom_call.1} parent=5 // pred_check
        %p103 = pneg %p102
      $region18: #{tpu_custom_call.1} parent=5 // pred_check_branch
        %105 = sbr.rel (%p103) target = $region20
      $region19: #{tpu_custom_call.1} parent=5 // pred_region
        // Predicated region
        $region21: #{tpu_custom_call.1} parent=19 // pred_check
          %p106 = pneg %p31
        $region22: #{tpu_custom_call.1} parent=19 // pred_check_branch
          %108 = sbr.rel (%p106) target = $region24
        $region23: #{tpu_custom_call.1} parent=19 // pred_region
          %p109 = scmp.lt.s32.totalorder %s11, 1
          %s110 = scalar_select %p109, %s11, 1
          %s111 = smul.addr %s110, 8
          %s112 = scalar_lea.vmem %s0, %s111
        $region24: #{tpu_custom_call.1} parent=19 // pred_fallthru
          _
      $region20: #{tpu_custom_call.1} parent=5 // pred_fallthru
        _
      %p113 = scmp.le.s32.totalorder 1, %s11
      %p114 = scmp.lt.s32.totalorder %s11, 3
      %p115 = pnand %p113, %p114
      %p116 = pneg %p115
      // Predicated region
      $region25: #{tpu_custom_call.1} parent=5 // pred_check
        _
      $region26: #{tpu_custom_call.1} parent=5 // pred_check_branch
        %118 = sbr.rel (%p115) target = $region28
      $region27: #{tpu_custom_call.1} parent=5 // pred_region
        %s119 = ssub.s32 %s11, 1
        %p120 = scmp.lt.s32.totalorder %s16, 1
        %s121 = scalar_select %p120, %s16, 1
        %s122 = smul.addr %s121, 8
        %s123 = scalar_lea.vmem %s0, %s122
        %p124 = pneg %p37
        %p125 = pneg %p34
        %p126 = pneg %p58
        %p127 = pneg %p55
        %p128 = pneg %p84
        %p129 = pneg %p81
        %s130 = sand.u32 %s71, 1
        %s131 = scalar_lea.sflag [#allocation3], %s130
        %s132 = sand.u32 %s71, 1
        %s133 = smul.addr %s132, 8
        %s134 = scalar_lea.vmem [#allocation2], %s133
        %p135 = scmp.lt.s32.totalorder %s16, 1
        %s136 = scalar_select %p135, %s16, 1
        %s137 = smul.addr %s136, 8
        %s138 = scalar_lea.vmem %s0, %s137
        %v139 = vld [vmem:[%s138] sm:$0xff]
        %v140 = vld [vmem:[%s1] sm:$0xff]
        %v141 = vld [vmem:[%s1 + $0x8] sm:$0xff]
        %v142 = vld [vmem:[%s1 + $0x10] sm:$0xff]
        %v143 = vld [vmem:[%s1 + $0x18] sm:$0xff]
        %vm144 = vcmask 261120
        %v146 = vsel %vm144, %v139, 0
        %148 = vmatprep.subr.mxu0 0.0
        %149 = vmatpush1.msra.mxu0 0.0
        %150 = vmatprep.subr.mxu0 0.0
        %151 = vmatpush1.msra.mxu0 0.0
        %152 = vmatprep.subr.mxu0 0.0
        %153 = vmatpush1.msra.mxu0 0.0
        %154 = vmatprep.subr.mxu0 0.0
        %155 = vmatpush1.msra.mxu0 0.0
        %156 = vmatprep.subr.mxu0 0.0
        %157 = vmatpush1.msra.mxu0 0.0
        %158 = vmatprep.subr.mxu0 0.0
        %159 = vmatpush1.msra.mxu0 0.0
        %160 = vmatprep.subr.mxu0 0.0
        %161 = vmatpush1.msra.mxu0 0.0
        %162 = vmatprep.subr.mxu0 0.0
        %163 = vmatpush1.msra.mxu0 0.0
        %164 = vmatprep.subr.mxu0 0.0
        %165 = vmatpush1.msra.mxu0 0.0
        %166 = vmatprep.subr.mxu0 0.0
        %167 = vmatpush1.msra.mxu0 0.0
        %168 = vmatprep.subr.mxu0 0.0
        %169 = vmatpush1.msra.mxu0 0.0
        %170 = vmatprep.subr.mxu0 0.0
        %171 = vmatpush1.msra.mxu0 0.0
        %172 = vmatprep.subr.mxu0 0.0
        %173 = vmatpush1.msra.mxu0 %v143
        %174 = vmatprep.subr.mxu0 0.0
        %175 = vmatpush1.msra.mxu0 %v142
        %176 = vmatprep.subr.mxu0 0.0
        %177 = vmatpush1.msra.mxu0 %v141
        %178 = vmatprep.subr.mxu0 0.0
        %179 = vmatpush1.msra.mxu0 %v140
        %180 = vmatprep.subr.mxu0 0.0
        %181 = vmatpush2.msra.mxu0 0.0
        %182 = vmatprep.subr.mxu0 0.0
        %183 = vmatpush2.msra.mxu0 0.0
        %184 = vmatprep.subr.mxu0 0.0
        %185 = vmatpush2.msra.mxu0 0.0
        %186 = vmatprep.subr.mxu0 0.0
        %187 = vmatpush2.msra.mxu0 0.0
        %188 = vmatprep.subr.mxu0 0.0
        %189 = vmatpush2.msra.mxu0 0.0
        %190 = vmatprep.subr.mxu0 0.0
        %191 = vmatpush2.msra.mxu0 0.0
        %192 = vmatprep.subr.mxu0 0.0
        %193 = vmatpush2.msra.mxu0 0.0
        %194 = vmatprep.subr.mxu0 0.0
        %195 = vmatpush2.msra.mxu0 0.0
        %196 = vmatprep.subr.mxu0 0.0
        %197 = vmatpush2.msra.mxu0 0.0
        %198 = vmatprep.subr.mxu0 0.0
        %199 = vmatpush2.msra.mxu0 0.0
        %200 = vmatprep.subr.mxu0 0.0
        %201 = vmatpush2.msra.mxu0 0.0
        %202 = vmatprep.subr.mxu0 0.0
        %203 = vmatpush2.msra.mxu0 0.0
        %204 = vmatprep.subr.mxu0 0.0
        %205 = vmatpush2.msra.mxu0 0.0
        %206 = vmatprep.subr.mxu0 0.0
        %207 = vmatpush2.msra.mxu0 0.0
        %208 = vmatprep.subr.mxu0 0.0
        %209 = vmatpush2.msra.mxu0 0.0
        %210 = vmatprep.subr.mxu0 0.0
        %211 = vmatpush2.msra.mxu0 0.0
        %212 = vmatprep.mubr.f32.mxu0 0.0
        %213 = vmatmul.mubr.f32.gmra.mxu0 %v146
        %v214 = vpop.f32.mrf.mxu0
        %v215 = vadd.f32 0.0, %v214
        %v216 = vpop.f32.mrf.mxu0
        %217 = vdwg.mxu0
        %v218 = vmax.f32 %v215, 0.0
        %vm219 = vcmask 130048
        %220 = vst.msk [vmem:[%s134] sm:$0xff] %vm219, %v218
        %s221 = sand.u32 %s71, 1
        %s222 = scalar_lea.sflag [#allocation3], %s221
        %s223 = sand.u32 %s71, 1
        %s224 = smul.addr %s223, 8
        %s225 = scalar_lea.vmem [#allocation2], %s224
        // Predicated region
        $region29: #{tpu_custom_call.1} parent=27 // pred_check
          %p226 = pneg %p81
        $region30: #{tpu_custom_call.1} parent=27 // pred_check_branch
          %228 = sbr.rel (%p226) target = $region32
        $region31: #{tpu_custom_call.1} parent=27 // pred_region
          %s230 = ssub.s32 128, 128
          %231 = vsyncadd %s222, %s230
          %s232 = smul.addr %s16, 128
          %s233 = scalar_lea.hbm %s2, %s232
          %s235 = sshll.u32 %s225, 4
          %s236 = int_to_ptr.vmem [resolvable:$true] %s235
          %238 = dma.vmem_to_hbm [thread:$0]  %s236, 128, %s233, %s222
        $region32: #{tpu_custom_call.1} parent=27 // pred_fallthru
          _
      $region28: #{tpu_custom_call.1} parent=5 // pred_fallthru
        _
      %p239 = scmp.le.s32.totalorder 2, %s11
      // Predicated region
      $region33: #{tpu_custom_call.1} parent=5 // pred_check
        %p240 = pneg %p239
      $region34: #{tpu_custom_call.1} parent=5 // pred_check_branch
        %242 = sbr.rel (%p240) target = $region36
      $region35: #{tpu_custom_call.1} parent=5 // pred_region
        %s243 = ssub.s32 %s11, 2
        // Predicated region
        $region37: #{tpu_custom_call.1} parent=35 // pred_check
          %p244 = pneg %p87
        $region38: #{tpu_custom_call.1} parent=35 // pred_check_branch
          %246 = sbr.rel (%p244) target = $region40
        $region39: #{tpu_custom_call.1} parent=35 // pred_region
          %s247 = sand.u32 %s72, 1
          %s248 = scalar_lea.sflag [#allocation3], %s247
          %s249 = sand.u32 %s72, 1
          %s250 = smul.addr %s249, 8
          %s251 = scalar_lea.vmem [#allocation2], %s250
          %252 = dma.done %s248, 128
        $region40: #{tpu_custom_call.1} parent=35 // pred_fallthru
          _
      $region36: #{tpu_custom_call.1} parent=5 // pred_fallthru
        _
    $region6: #{tpu_custom_call.1} parent=1 // loop_footer
      %s15 = sadd.s32 1, %s11
    $region7: #{tpu_custom_call.1} parent=1 // loop_footer_branch
      %10 = sbr.rel target = $region3
    $region8: #{tpu_custom_call.1} parent=1 // loop_exit
      _
    %253 = vsyncpa [#allocation3], 1
    %s254 = scalar_lea.sflag [#allocation3], 1
    %255 = vsyncpa %s254, 1

</llo_original>
